<compile_context>
chip_gen: v6e
topology: v6e:2x2x1
jax: 0.10.0
libtpu: 0.0.40
codegen_flags: <defaults>
</compile_context>

<pallas_src>
import functools
import math

import jax
import jax.numpy as jnp
import numpy as np
from jax.experimental import pallas as pl
from jax.experimental.pallas import tpu as pltpu

DILATIONS = (1, 3, 9)
RF_HALO = 3 * sum(DILATIONS)      # 39: receptive-field halo of the three residual units
HALO_PAD = 64                     # halo per side; must cover RF_HALO (mask-free taps)
LANE = 128

assert RF_HALO <= HALO_PAD, "halo must contain the residual-unit receptive field"


def _round_up(n, m):
    return ((n + m - 1) // m) * m


def _snake(x, alpha, inv_alpha):
    # snake(x) = x + 1/(alpha + 1e-9) * sin(alpha * x)^2, inv_alpha precomputed in wrapper
    s = jnp.sin(alpha * x)
    return x + inv_alpha * (s * s)


# --------------------------- stage A kernel ---------------------------
def _snake_convt_kernel(xm_ref, xn_ref, a0_ref, ia0_ref, w_ref, bt_ref, out_ref,
                        *, stride, tile_m):
    a0, ia0 = a0_ref[...], ia0_ref[...]
    # snake computed once; snake(0) == 0 keeps the zero extension of x exact.
    xl = _snake(xm_ref[0], a0, ia0)                         # (c_in, tm) f32
    xn = _snake(xn_ref[0, :, 0:1], a0, ia0)                 # (c_in, 1)  f32 (next column)
    lane = jax.lax.broadcasted_iota(jnp.int32, xl.shape, 1)
    # shifted stream: xh[:, j] = xl[:, j+1], last column patched from the next block
    xh = jnp.where(lane == tile_m - 1, xn,
                   pltpu.roll(xl, shift=tile_m - 1, axis=1))
    # fused operand: [snake(x_hi); snake(x_lo)] along sublanes -> one matmul per phase
    xcat = jnp.concatenate([xh, xl], axis=0).astype(jnp.bfloat16)   # (2*c_in, tm)
    bt = bt_ref[...]
    phases = [jnp.dot(w_ref[r], xcat, preferred_element_type=jnp.float32) + bt
              for r in range(stride)]
    # single coalesced store of all phases (v5e has one vector-store slot)
    out_ref[0] = jnp.stack(phases, axis=0).astype(out_ref.dtype)


# --------------------------- stage B kernel ---------------------------
def _residual_units_kernel(hc_ref, hr_ref, a_ref, ia_ref, w7_ref, b7_ref,
                           w1_ref, b1_ref, out_ref, *, tile_l, l_out):
    c_out = hc_ref.shape[1]
    tw = tile_l + 2 * HALO_PAD
    t = pl.program_id(1)

    # hoisted lane index / sequence-validity mask (true zero padding at seq edges)
    lane = jax.lax.broadcasted_iota(jnp.int32, (c_out, tw), 1)
    gpos = lane + t * tile_l - HALO_PAD
    seq_mask = jnp.logical_and(gpos >= 0, gpos < l_out)

    # halo window assembled in VMEM from two lane-aligned blocks (no HBM stacking)
    h = jnp.concatenate([hc_ref[0], hr_ref[0]], axis=1).astype(jnp.float32)  # (C, tw)

    for u, d in enumerate(DILATIONS):
        ya = _snake(h, a_ref[2 * u], ia_ref[2 * u])
        ya = jnp.where(seq_mask, ya, 0.0)          # conv zero-padding at seq ends
        # 7 dilated taps via circular rolls (XLU); wrap contamination stays within
        # RF_HALO <= HALO_PAD lanes of the window edges, outside the cropped center,
        # so no per-tap edge masks are needed.
        taps = [ya if k == 3 else
                pltpu.roll(ya, shift=(-(k - 3) * d) % tw, axis=1)
                for k in range(7)]
        stacked = jnp.concatenate(taps, axis=0).astype(jnp.bfloat16)   # (7*C, tw)
        acc = jnp.dot(w7_ref[u], stacked,
                      preferred_element_type=jnp.float32) + b7_ref[u]   # one deep-K matmul
        yb = _snake(acc, a_ref[2 * u + 1], ia_ref[2 * u + 1])
        y = jnp.dot(w1_ref[u], yb.astype(jnp.bfloat16),
                    preferred_element_type=jnp.float32) + b1_ref[u]
        h = h + y                                  # residual (same length)

    out_ref[0] = h[:, HALO_PAD:HALO_PAD + tile_l].astype(out_ref.dtype)


# ----------------------------- wrapper -----------------------------
def decoder_block_forward(x, params, *, stride, max_tile_m=512, max_tile_l=512,
                          vmem_limit_bytes=32 * 1024 * 1024):
    B, c_in, L = x.shape
    s = stride
    kt = 2 * s
    p_t = math.ceil(s / 2)
    op = s % 2
    l_out = (L - 1) * s - 2 * p_t + kt + op
    assert l_out == L * s
    c_out = params["wt"].shape[1]
    f32, bf16 = jnp.float32, jnp.bfloat16

    # ---- stage A: Snake + phase-split ConvTranspose1d ----
    tm = min(max_tile_m, _round_up(L + 1, LANE))
    lp = _round_up(L + 1, tm)
    n_mt = lp // tm
    # single staging array: x_ext = [0, x, 0...] + one spare 128-lane block so every
    # tile can fetch its "next" column; the 1-shifted stream is built in VMEM.
    x_ext = jnp.zeros((B, c_in, lp + LANE), f32).at[:, :, 1:1 + L].set(x.astype(f32))

    wt = params["wt"].astype(f32)                                   # (C_in, C_out, 2s)
    w_hi = jnp.transpose(wt[:, :, :s], (2, 1, 0))                   # (s, C_out, C_in), taps r
    w_lo = jnp.transpose(wt[:, :, s:], (2, 1, 0))                   # taps r+s
    w_cat = jnp.concatenate([w_hi, w_lo], axis=2).astype(bf16)      # (s, C_out, 2*C_in)
    bt = params["bt"].reshape(c_out, 1).astype(f32)
    alpha0 = params["alpha0"].reshape(c_in, 1).astype(f32)
    inv_alpha0 = 1.0 / (alpha0 + 1e-9)

    phases = pl.pallas_call(
        functools.partial(_snake_convt_kernel, stride=s, tile_m=tm),
        out_shape=jax.ShapeDtypeStruct((B, s, c_out, lp), bf16),
        grid_spec=pltpu.PrefetchScalarGridSpec(
            num_scalar_prefetch=0,
            grid=(B, n_mt),
            in_specs=[
                pl.BlockSpec((1, c_in, tm), lambda b, t: (b, 0, t)),
                pl.BlockSpec((1, c_in, LANE),
                             lambda b, t: (b, 0, (t + 1) * (tm // LANE))),
                pl.BlockSpec((c_in, 1), lambda b, t: (0, 0)),
                pl.BlockSpec((c_in, 1), lambda b, t: (0, 0)),
                pl.BlockSpec((s, c_out, 2 * c_in), lambda b, t: (0, 0, 0)),
                pl.BlockSpec((c_out, 1), lambda b, t: (0, 0)),
            ],
            out_specs=pl.BlockSpec((1, s, c_out, tm), lambda b, t: (b, 0, 0, t)),
        ),
        compiler_params=pltpu.CompilerParams(
            dimension_semantics=("parallel", "parallel"),
            vmem_limit_bytes=vmem_limit_bytes),
    )(x_ext, x_ext, alpha0, inv_alpha0, w_cat, bt)

    # phase interleave (layout glue) + crop + halo frame: fuses into one XLA copy
    # producing the framed stage-B input (no per-tile window materialization).
    h = jnp.transpose(phases, (0, 2, 3, 1)).reshape(B, c_out, lp * s)
    h = h[:, :, p_t:p_t + l_out]                                    # (B, C_out, l_out) bf16

    # ---- stage B: three ResidualUnits on L-tiles with halo windows ----
    tl = min(max_tile_l, _round_up(l_out, LANE))
    l_pad = _round_up(l_out, tl)
    n_t = l_pad // tl
    h_framed = jnp.pad(h, ((0, 0), (0, 0), (HALO_PAD, HALO_PAD + l_pad - l_out)))

    alpha_ru = jnp.stack(
        [params["alpha_a" if j == 0 else "alpha_b"][u].reshape(c_out, 1)
         for u in range(3) for j in range(2)], axis=0).astype(f32)   # (6, C_out, 1)
    inv_alpha_ru = 1.0 / (alpha_ru + 1e-9)
    # all 7 conv taps fused along K: (3, C_out, 7*C_out)
    w7 = jnp.stack(
        [jnp.transpose(params["w7"][u], (0, 2, 1)).reshape(c_out, 7 * c_out)
         for u in range(3)], axis=0).astype(bf16)
    b7 = jnp.stack([params["b7"][u].reshape(c_out, 1) for u in range(3)]).astype(f32)
    w1 = jnp.stack([params["w1"][u][:, :, 0] for u in range(3)]).astype(bf16)
    b1 = jnp.stack([params["b1"][u].reshape(c_out, 1) for u in range(3)]).astype(f32)

    out_pad = pl.pallas_call(
        functools.partial(_residual_units_kernel, tile_l=tl, l_out=l_out),
        out_shape=jax.ShapeDtypeStruct((B, c_out, l_pad), x.dtype),
        grid_spec=pltpu.PrefetchScalarGridSpec(
            num_scalar_prefetch=0,
            grid=(B, n_t),
            in_specs=[
                # halo window = aligned center block + aligned right-halo block
                pl.BlockSpec((1, c_out, tl), lambda b, t: (b, 0, t)),
                pl.BlockSpec((1, c_out, LANE),
                             lambda b, t: (b, 0, (t + 1) * (tl // LANE))),
                pl.BlockSpec((6, c_out, 1), lambda b, t: (0, 0, 0)),
                pl.BlockSpec((6, c_out, 1), lambda b, t: (0, 0, 0)),
                pl.BlockSpec((3, c_out, 7 * c_out), lambda b, t: (0, 0, 0)),
                pl.BlockSpec((3, c_out, 1), lambda b, t: (0, 0, 0)),
                pl.BlockSpec((3, c_out, c_out), lambda b, t: (0, 0, 0)),
                pl.BlockSpec((3, c_out, 1), lambda b, t: (0, 0, 0)),
            ],
            out_specs=pl.BlockSpec((1, c_out, tl), lambda b, t: (b, 0, t)),
        ),
        compiler_params=pltpu.CompilerParams(
            dimension_semantics=("parallel", "parallel"),
            vmem_limit_bytes=vmem_limit_bytes),
    )(h_framed, h_framed, alpha_ru, inv_alpha_ru, w7, b7, w1, b1)
    return out_pad[:, :, :l_out]


# ---------------- pure-JAX reference (correctness check only) ----------------
def _snake_ref(x, alpha):
    a = alpha.reshape(1, -1, 1)
    return x + (1.0 / (a + 1e-9)) * jnp.sin(a * x) ** 2


def _conv1d_ref(x, w, b, dilation, padding):
    out = jax.lax.conv_general_dilated(
        x, w, window_strides=(1,), padding=[(padding, padding)],
        rhs_dilation=(dilation,), dimension_numbers=("NCH", "OIH", "NCH"),
        precision=jax.lax.Precision.HIGHEST)
    return out + b.reshape(1, -1, 1)


def _conv_transpose1d_ref(x, wt, b, stride, padding, output_padding):
    k = wt.shape[-1]
    w = jnp.transpose(wt[:, :, ::-1], (1, 0, 2))      # (C_out, C_in, K)
    out = jax.lax.conv_general_dilated(
        x, w, window_strides=(1,),
        padding=[(k - 1 - padding, k - 1 - padding + output_padding)],
        lhs_dilation=(stride,), dimension_numbers=("NCH", "OIH", "NCH"),
        precision=jax.lax.Precision.HIGHEST)
    return out + b.reshape(1, -1, 1)


def decoder_block_ref(x, params, *, stride):
    p_t = math.ceil(stride / 2)
    op = stride % 2
    h = _snake_ref(x, params["alpha0"])
    h = _conv_transpose1d_ref(h, params["wt"], params["bt"], stride, p_t, op)
    for u, d in enumerate(DILATIONS):
        y = _snake_ref(h, params["alpha_a"][u])
        y = _conv1d_ref(y, params["w7"][u], params["b7"][u], d, 3 * d)
        y = _snake_ref(y, params["alpha_b"][u])
        y = _conv1d_ref(y, params["w1"][u], params["b1"][u], 1, 0)
        h = h + y
    return h


# ----------------------------- test harness -----------------------------
def _make_params(key, c_in, c_out, stride):
    ki = iter(jax.random.split(key, 40))

    def nrm(shape, scale):
        return scale * jax.random.normal(next(ki), shape, jnp.float32)

    # Synthetic *effective* parameters (weight_norm folded in).
    return {
        "alpha0": 1.0 + 0.1 * jax.random.normal(next(ki), (c_in,), jnp.float32),
        "wt": nrm((c_in, c_out, 2 * stride), 0.15),
        "bt": nrm((c_out,), 0.05),
        "alpha_a": [1.0 + 0.1 * jax.random.normal(next(ki), (c_out,), jnp.float32) for _ in range(3)],
        "w7": [nrm((c_out, c_out, 7), 0.09) for _ in range(3)],
        "b7": [nrm((c_out,), 0.05) for _ in range(3)],
        "alpha_b": [1.0 + 0.1 * jax.random.normal(next(ki), (c_out,), jnp.float32) for _ in range(3)],
        "w1": [nrm((c_out, c_out, 1), 0.18) for _ in range(3)],
        "b1": [nrm((c_out,), 0.05) for _ in range(3)],
    }


def _run_case(key, B, c_in, c_out, L, stride):
    kp, kx = jax.random.split(key)
    params = _make_params(kp, c_in, c_out, stride)
    x = jax.random.normal(kx, (B, c_in, L), jnp.float32)

    out = jax.block_until_ready(decoder_block_forward(x, params, stride=stride))
    assert out.shape == (B, c_out, L * stride), out.shape

    ref = jax.block_until_ready(decoder_block_ref(x, params, stride=stride))
    # bf16 MXU operands (f32 accumulation) -> relaxed tolerance vs the f32 reference.
    if not np.allclose(np.asarray(out), np.asarray(ref), rtol=5e-2, atol=5e-2):
        diff = float(np.max(np.abs(np.asarray(out) - np.asarray(ref))))
        raise SystemExit(f"mismatch vs reference (stride={stride}), max abs diff = {diff}")


if __name__ == "__main__":
    key = jax.random.PRNGKey(0)
    k1, k2 = jax.random.split(key)
    _run_case(k1, B=2, c_in=16, c_out=8, L=16, stride=2)    # even stride
    _run_case(k2, B=2, c_in=8, c_out=16, L=10, stride=3)    # odd stride (output_padding=1)
    print("KERNEL_OK")
</pallas_src>

<mosaic_0001>
module attributes {stable_mosaic.version = 11 : i64} {
  func.func @_snake_convt_kernel(%arg0: i32, %arg1: i32, %arg2: memref<1x16x128xf32, #tpu.memory_space<vmem>>, %arg3: memref<1x16x128xf32, #tpu.memory_space<vmem>>, %arg4: memref<16x1xf32, #tpu.memory_space<vmem>>, %arg5: memref<16x1xf32, #tpu.memory_space<vmem>>, %arg6: memref<2x8x32xbf16, #tpu.memory_space<vmem>>, %arg7: memref<8x1xf32, #tpu.memory_space<vmem>>, %arg8: memref<1x2x8x128xbf16, #tpu.memory_space<vmem>>) attributes {dimension_semantics = [#tpu.dimension_semantics<parallel>, #tpu.dimension_semantics<parallel>], iteration_bounds = array<i64: 2, 1>, scalar_prefetch = 0 : i64, scratch_operands = 0 : i64, tpu.core_type = #tpu.core_type<tc>, window_params = [{transform_indices = @transform_0, window_bounds = array<i64: 1, 16, 128>}, {transform_indices = @transform_1, window_bounds = array<i64: 1, 16, 128>}, {pipeline_mode = #tpu.pipeline_mode<synchronous>, transform_indices = @transform_2, window_bounds = array<i64: 16, 1>}, {pipeline_mode = #tpu.pipeline_mode<synchronous>, transform_indices = @transform_3, window_bounds = array<i64: 16, 1>}, {pipeline_mode = #tpu.pipeline_mode<synchronous>, transform_indices = @transform_4, window_bounds = array<i64: 2, 8, 32>}, {pipeline_mode = #tpu.pipeline_mode<synchronous>, transform_indices = @transform_5, window_bounds = array<i64: 8, 1>}, {transform_indices = @transform_6, window_bounds = array<i64: 1, 2, 8, 128>}]} {
    %c0 = arith.constant 0 : index
    %c0_0 = arith.constant 0 : index
    %0 = vector.load %arg4[%c0, %c0_0] : memref<16x1xf32, #tpu.memory_space<vmem>>, vector<16x1xf32>
    %c0_1 = arith.constant 0 : index
    %c0_2 = arith.constant 0 : index
    %1 = vector.load %arg5[%c0_1, %c0_2] : memref<16x1xf32, #tpu.memory_space<vmem>>, vector<16x1xf32>
    %c0_3 = arith.constant 0 : index
    %c0_4 = arith.constant 0 : index
    %c0_5 = arith.constant 0 : index
    %2 = vector.load %arg2[%c0_3, %c0_4, %c0_5] : memref<1x16x128xf32, #tpu.memory_space<vmem>>, vector<1x16x128xf32>
    %3 = vector.shape_cast %2 : vector<1x16x128xf32> to vector<16x128xf32>
    %4 = vector.broadcast %0 : vector<16x1xf32> to vector<16x128xf32>
    %5 = arith.mulf %4, %3 : vector<16x128xf32>
    %6 = math.sin %5 : vector<16x128xf32>
    %7 = arith.mulf %6, %6 : vector<16x128xf32>
    %8 = vector.broadcast %1 : vector<16x1xf32> to vector<16x128xf32>
    %9 = arith.mulf %8, %7 : vector<16x128xf32>
    %10 = arith.addf %3, %9 : vector<16x128xf32>
    %c0_6 = arith.constant 0 : index
    %c0_7 = arith.constant 0 : index
    %c0_8 = arith.constant 0 : index
    %11 = vector.load %arg3[%c0_6, %c0_7, %c0_8] : memref<1x16x128xf32, #tpu.memory_space<vmem>>, vector<1x16x1xf32>
    %12 = vector.shape_cast %11 : vector<1x16x1xf32> to vector<16x1xf32>
    %13 = arith.mulf %0, %12 : vector<16x1xf32>
    %14 = math.sin %13 : vector<16x1xf32>
    %15 = arith.mulf %14, %14 : vector<16x1xf32>
    %16 = arith.mulf %1, %15 : vector<16x1xf32>
    %17 = arith.addf %12, %16 : vector<16x1xf32>
    %18 = tpu.iota {dimensions = array<i32: 1>} : vector<16x128xi32>
    %c127_i32 = arith.constant 127 : i32
    %19 = vector.broadcast %c127_i32 : i32 to vector<16x128xi32>
    %20 = arith.cmpi eq, %18, %19 : vector<16x128xi32>
    %c127_i32_9 = arith.constant 127 : i32
    %21 = tpu.dynamic_rotate %10 by %c127_i32_9 dim 1 : vector<16x128xf32>, i32 -> vector<16x128xf32>
    %22 = vector.shape_cast %17 : vector<16x1xf32> to vector<16x1xf32>
    %23 = vector.broadcast %22 : vector<16x1xf32> to vector<16x128xf32>
    %24 = arith.select %20, %23, %21 : vector<16x128xi1>, vector<16x128xf32>
    %25 = tpu.concatenate %24, %10 in 0 : vector<16x128xf32>, vector<16x128xf32> -> vector<32x128xf32>
    %26 = arith.truncf %25 : vector<32x128xf32> to vector<32x128xbf16>
    %c0_10 = arith.constant 0 : index
    %c0_11 = arith.constant 0 : index
    %27 = vector.load %arg7[%c0_10, %c0_11] : memref<8x1xf32, #tpu.memory_space<vmem>>, vector<8x1xf32>
    %c0_12 = arith.constant 0 : index
    %c0_13 = arith.constant 0 : index
    %c0_14 = arith.constant 0 : index
    %28 = vector.load %arg6[%c0_12, %c0_13, %c0_14] : memref<2x8x32xbf16, #tpu.memory_space<vmem>>, vector<1x8x32xbf16>
    %29 = vector.shape_cast %28 : vector<1x8x32xbf16> to vector<8x32xbf16>
    %cst = arith.constant dense<0.000000e+00> : vector<8x128xf32>
    %30 = tpu.matmul %29, %26, %cst {dimension_numbers = #tpu.dot_dimension_numbers<[1], [0], [0], [1], [0, 0, 1, 1], [], []>} : vector<8x32xbf16>, vector<32x128xbf16>, vector<8x128xf32> -> vector<8x128xf32>
    %31 = vector.broadcast %27 : vector<8x1xf32> to vector<8x128xf32>
    %32 = arith.addf %30, %31 : vector<8x128xf32>
    %c1 = arith.constant 1 : index
    %c0_15 = arith.constant 0 : index
    %c0_16 = arith.constant 0 : index
    %33 = vector.load %arg6[%c1, %c0_15, %c0_16] : memref<2x8x32xbf16, #tpu.memory_space<vmem>>, vector<1x8x32xbf16>
    %34 = vector.shape_cast %33 : vector<1x8x32xbf16> to vector<8x32xbf16>
    %cst_17 = arith.constant dense<0.000000e+00> : vector<8x128xf32>
    %35 = tpu.matmul %34, %26, %cst_17 {dimension_numbers = #tpu.dot_dimension_numbers<[1], [0], [0], [1], [0, 0, 1, 1], [], []>} : vector<8x32xbf16>, vector<32x128xbf16>, vector<8x128xf32> -> vector<8x128xf32>
    %36 = vector.broadcast %27 : vector<8x1xf32> to vector<8x128xf32>
    %37 = arith.addf %35, %36 : vector<8x128xf32>
    %38 = vector.shape_cast %32 : vector<8x128xf32> to vector<1x8x128xf32>
    %39 = vector.shape_cast %37 : vector<8x128xf32> to vector<1x8x128xf32>
    %40 = tpu.concatenate %38, %39 in 0 : vector<1x8x128xf32>, vector<1x8x128xf32> -> vector<2x8x128xf32>
    %41 = arith.truncf %40 : vector<2x8x128xf32> to vector<2x8x128xbf16>
    %c0_18 = arith.constant 0 : index
    %c0_19 = arith.constant 0 : index
    %c0_20 = arith.constant 0 : index
    %c0_21 = arith.constant 0 : index
    %42 = vector.load %arg8[%c0_18, %c0_19, %c0_20, %c0_21] : memref<1x2x8x128xbf16, #tpu.memory_space<vmem>>, vector<1x2x8x128xbf16>
    %43 = vector.shape_cast %42 : vector<1x2x8x128xbf16> to vector<2x8x128xbf16>
    %44 = vector.shape_cast %41 : vector<2x8x128xbf16> to vector<1x2x8x128xbf16>
    tpu.vector_store %arg8[%c0_18, %c0_19, %c0_20, %c0_21], %44 {strides = array<i32>} : memref<1x2x8x128xbf16, #tpu.memory_space<vmem>>, vector<1x2x8x128xbf16>,
    return
  }
  func.func @transform_0(%arg0: i32, %arg1: i32) -> (i32, i32, i32) {
    %c0_i32 = arith.constant 0 : i32
    %c0_i32_0 = arith.constant 0 : i32
    return %arg0, %c0_i32, %arg1 : i32, i32, i32
  }
  func.func @transform_1(%arg0: i32, %arg1: i32) -> (i32, i32, i32) {
    %c1_i32 = arith.constant 1 : i32
    %0 = arith.addi %arg1, %c1_i32 : i32
    %c1_i32_0 = arith.constant 1 : i32
    %1 = arith.muli %0, %c1_i32_0 : i32
    %c0_i32 = arith.constant 0 : i32
    %c0_i32_1 = arith.constant 0 : i32
    return %arg0, %c0_i32, %1 : i32, i32, i32
  }
  func.func @transform_2(%arg0: i32, %arg1: i32) -> (i32, i32) {
    %c0_i32 = arith.constant 0 : i32
    %c0_i32_0 = arith.constant 0 : i32
    %c0_i32_1 = arith.constant 0 : i32
    return %c0_i32, %c0_i32_0 : i32, i32
  }
  func.func @transform_3(%arg0: i32, %arg1: i32) -> (i32, i32) {
    %c0_i32 = arith.constant 0 : i32
    %c0_i32_0 = arith.constant 0 : i32
    %c0_i32_1 = arith.constant 0 : i32
    return %c0_i32, %c0_i32_0 : i32, i32
  }
  func.func @transform_4(%arg0: i32, %arg1: i32) -> (i32, i32, i32) {
    %c0_i32 = arith.constant 0 : i32
    %c0_i32_0 = arith.constant 0 : i32
    %c0_i32_1 = arith.constant 0 : i32
    %c0_i32_2 = arith.constant 0 : i32
    return %c0_i32, %c0_i32_0, %c0_i32_1 : i32, i32, i32
  }
  func.func @transform_5(%arg0: i32, %arg1: i32) -> (i32, i32) {
    %c0_i32 = arith.constant 0 : i32
    %c0_i32_0 = arith.constant 0 : i32
    %c0_i32_1 = arith.constant 0 : i32
    return %c0_i32, %c0_i32_0 : i32, i32
  }
  func.func @transform_6(%arg0: i32, %arg1: i32) -> (i32, i32, i32, i32) {
    %c0_i32 = arith.constant 0 : i32
    %c0_i32_0 = arith.constant 0 : i32
    %c0_i32_1 = arith.constant 0 : i32
    return %arg0, %c0_i32, %c0_i32_0, %arg1 : i32, i32, i32, i32
  }
}

</mosaic_0001>

<llo_original>
// kernel: tpu_custom_call.1
$region0: #{tpu_custom_call.1}
  #allocation0 [shape = 'u32[]', space=smem, size = 0x4, offset = 0x4, fixed_abs, tag = 'smem constant byte address 0x4 - core index']
  #allocation1 [shape = 'u32[144,128]{1,0:T(1,128)}', space=vmem, size = 0x12000, scoped, tag = 'internal scratch']
  %s0 = inlined_call_operand.hbm [shape: f32[2,16,256], index: 0, kind: input, shape index: {}]
  %s1 = inlined_call_operand.hbm [shape: f32[2,16,256], index: 1, kind: input, shape index: {}]
  %s2 = inlined_call_operand.vmem [shape: f32[16,1], index: 2, kind: input, shape index: {}]
  %s3 = inlined_call_operand.vmem [shape: f32[16,1], index: 3, kind: input, shape index: {}]
  %s4 = inlined_call_operand.vmem [shape: bf16[2,8,32], index: 4, kind: input, shape index: {}]
  %s5 = inlined_call_operand.vmem [shape: f32[8,1], index: 5, kind: input, shape index: {}]
  %s6 = inlined_call_operand.hbm [shape: bf16[2,2,8,128], index: 6, kind: output, shape index: {}]
  %s7 = sld [smem:[#allocation0]]
  $region65: #{tpu_custom_call.1} parent=0
    _
  %s9 = ssub.s32 1, %s7
  %s10 = scalar_select 0, %s9, %s7
  $region1: #{tpu_custom_call.1} parent=0
    #allocation2 [shape = 'u8[16384]{0}', space=vmem, size = 0x4000, scoped, tag = 'input window, operand 0']
    #allocation3 [shape = 's32[2]{0}', space=sflag, size = 0x8, scoped, tag = 'scoped memory for tpu_custom_call.1']
    #allocation4 [shape = 's32[2]{0}', space=sflag, size = 0x8, scoped, tag = 'scoped memory for tpu_custom_call.1']
    #allocation5 [shape = 'u8[16384]{0}', space=vmem, size = 0x4000, scoped, tag = 'input window, operand 1']
    #allocation6 [shape = 's32[2]{0}', space=sflag, size = 0x8, scoped, tag = 'scoped memory for tpu_custom_call.1']
    #allocation7 [shape = 'u8[8192]{0}', space=vmem, size = 0x2000, scoped, tag = 'output window, operand 0']
    %11 = vsyncpa [#allocation3], 0
    %s12 = scalar_lea.sflag [#allocation3], 1
    %13 = vsyncpa %s12, 0
    %14 = vsyncpa [#allocation6], 0
    %s15 = scalar_lea.sflag [#allocation6], 1
    %16 = vsyncpa %s15, 0
    %17 = vsyncpa [#allocation4], 0
    %s18 = scalar_lea.sflag [#allocation4], 1
    %19 = vsyncpa %s18, 0
    loop: start=0, step=1, limit=4
    $region2: #{tpu_custom_call.1} parent=1 // loop_pre_header
      _
    $region3: #{tpu_custom_call.1} parent=1 // loop_header
      %s21 = sphi 0, %s25
      %p22 = scmp.ge.s32.totalorder %s21, 4
      %s28 = sphi 0, %s40
      %s29 = sphi 0, %s36
      %s30 = sphi 0, %s28
      %s31 = sphi 0, %s29
      %s32 = sphi 0, %s30
      %s33 = sphi 0, %s31
      %s45 = sphi 0, %s47
      %s48 = sphi 0, %s45
      %s49 = sphi 0, %s48
      %s65 = sphi 0, %s49
      %s75 = sphi 0, %s77
      %s78 = sphi 0, %s75
      %s79 = sphi 0, %s78
      %s95 = sphi 0, %s79
      %s99 = sphi 0, %s99
      %s101 = sphi 0, %s99
      %s102 = sphi 0, %s101
      %s116 = sphi 0, %s102
      %s120 = sphi 0, %s120
      %s122 = sphi 0, %s120
      %s123 = sphi 0, %s122
      %s137 = sphi 0, %s123
      %s141 = sphi 0, %s141
      %s143 = sphi 0, %s141
      %s144 = sphi 0, %s143
      %s158 = sphi 0, %s144
      %s162 = sphi 0, %s162
      %s164 = sphi 0, %s162
      %s165 = sphi 0, %s164
      %s179 = sphi 0, %s165
      %s187 = sphi 0, %s189
      %s190 = sphi 0, %s187
      %s191 = sphi 0, %s190
      %s207 = sphi 0, %s191
    $region4: #{tpu_custom_call.1} parent=1 // loop_header_branch
      %24 = sbr.rel (%p22) target = $region8
    $region5: #{tpu_custom_call.1} parent=1 // loop_body
      %s26 = ssub.s32 %s21, 1
      %s27 = ssub.s32 %s21, 2
      %s34 = sadd.s32 1, %s29
      %p35 = scmp.ge.s32.totalorder %s34, 1
      %s36 = scalar_select %p35, 0, %s34
      %s37 = sadd.s32 1, %s28
      %s38 = scalar_select %p35, %s37, %s28
      %p39 = scmp.ge.s32.totalorder %s38, 2
      %s40 = scalar_select %p39, 0, %s38
      %s41 = ssub.s32 %s28, %s40
      %s42 = ssub.s32 %s29, %s36
      %s43 = sor.u32 %s41, %s42
      %p44 = scmp.eq.s32.totalorder %s43, 0
      %s46 = sadd.s32 %s45, 1
      %s47 = scalar_select %p44, %s45, %s46
      %p50 = pneg %p44
      %p51 = scmp.eq.s32.totalorder %s21, 1
      %p52 = por %p50, %p51
      %p53 = scmp.ne.s32.totalorder %s45, %s48
      %p54 = scmp.eq.s32.totalorder %s21, 0
      %p55 = por %p53, %p54
      %p56 = scmp.ne.s32.totalorder %s45, %s48
      %p57 = scmp.eq.s32.totalorder %s26, 1
      %p58 = por %p56, %p57
      %p59 = scmp.ne.s32.totalorder %s48, %s49
      %p60 = scmp.eq.s32.totalorder %s26, 0
      %p61 = por %p59, %p60
      %p62 = scmp.ne.s32.totalorder %s48, %s49
      %p63 = scmp.eq.s32.totalorder %s27, 1
      %p64 = por %p62, %p63
      %p66 = scmp.ne.s32.totalorder %s49, %s65
      %p67 = scmp.eq.s32.totalorder %s27, 0
      %p68 = por %p66, %p67
      %s69 = sadd.s32 %s29, 1
      %s70 = sadd.s32 %s36, 1
      %s71 = ssub.s32 %s28, %s40
      %s72 = ssub.s32 %s69, %s70
      %s73 = sor.u32 %s71, %s72
      %p74 = scmp.eq.s32.totalorder %s73, 0
      %s76 = sadd.s32 %s75, 1
      %s77 = scalar_select %p74, %s75, %s76
      %p80 = pneg %p74
      %p81 = scmp.eq.s32.totalorder %s21, 1
      %p82 = por %p80, %p81
      %p83 = scmp.ne.s32.totalorder %s75, %s78
      %p84 = scmp.eq.s32.totalorder %s21, 0
      %p85 = por %p83, %p84
      %p86 = scmp.ne.s32.totalorder %s75, %s78
      %p87 = scmp.eq.s32.totalorder %s26, 1
      %p88 = por %p86, %p87
      %p89 = scmp.ne.s32.totalorder %s78, %s79
      %p90 = scmp.eq.s32.totalorder %s26, 0
      %p91 = por %p89, %p90
      %p92 = scmp.ne.s32.totalorder %s78, %s79
      %p93 = scmp.eq.s32.totalorder %s27, 1
      %p94 = por %p92, %p93
      %p96 = scmp.ne.s32.totalorder %s79, %s95
      %p97 = scmp.eq.s32.totalorder %s27, 0
      %p98 = por %p96, %p97
      %s100 = sadd.s32 %s99, 1
      %p103 = scmp.eq.s32.totalorder %s21, 1
      %p104 = scmp.ne.s32.totalorder %s99, %s101
      %p105 = scmp.eq.s32.totalorder %s21, 0
      %p106 = por %p104, %p105
      %p107 = scmp.ne.s32.totalorder %s99, %s101
      %p108 = scmp.eq.s32.totalorder %s26, 1
      %p109 = por %p107, %p108
      %p110 = scmp.ne.s32.totalorder %s101, %s102
      %p111 = scmp.eq.s32.totalorder %s26, 0
      %p112 = por %p110, %p111
      %p113 = scmp.ne.s32.totalorder %s101, %s102
      %p114 = scmp.eq.s32.totalorder %s27, 1
      %p115 = por %p113, %p114
      %p117 = scmp.ne.s32.totalorder %s102, %s116
      %p118 = scmp.eq.s32.totalorder %s27, 0
      %p119 = por %p117, %p118
      %s121 = sadd.s32 %s120, 1
      %p124 = scmp.eq.s32.totalorder %s21, 1
      %p125 = scmp.ne.s32.totalorder %s120, %s122
      %p126 = scmp.eq.s32.totalorder %s21, 0
      %p127 = por %p125, %p126
      %p128 = scmp.ne.s32.totalorder %s120, %s122
      %p129 = scmp.eq.s32.totalorder %s26, 1
      %p130 = por %p128, %p129
      %p131 = scmp.ne.s32.totalorder %s122, %s123
      %p132 = scmp.eq.s32.totalorder %s26, 0
      %p133 = por %p131, %p132
      %p134 = scmp.ne.s32.totalorder %s122, %s123
      %p135 = scmp.eq.s32.totalorder %s27, 1
      %p136 = por %p134, %p135
      %p138 = scmp.ne.s32.totalorder %s123, %s137
      %p139 = scmp.eq.s32.totalorder %s27, 0
      %p140 = por %p138, %p139
      %s142 = sadd.s32 %s141, 1
      %p145 = scmp.eq.s32.totalorder %s21, 1
      %p146 = scmp.ne.s32.totalorder %s141, %s143
      %p147 = scmp.eq.s32.totalorder %s21, 0
      %p148 = por %p146, %p147
      %p149 = scmp.ne.s32.totalorder %s141, %s143
      %p150 = scmp.eq.s32.totalorder %s26, 1
      %p151 = por %p149, %p150
      %p152 = scmp.ne.s32.totalorder %s143, %s144
      %p153 = scmp.eq.s32.totalorder %s26, 0
      %p154 = por %p152, %p153
      %p155 = scmp.ne.s32.totalorder %s143, %s144
      %p156 = scmp.eq.s32.totalorder %s27, 1
      %p157 = por %p155, %p156
      %p159 = scmp.ne.s32.totalorder %s144, %s158
      %p160 = scmp.eq.s32.totalorder %s27, 0
      %p161 = por %p159, %p160
      %s163 = sadd.s32 %s162, 1
      %p166 = scmp.eq.s32.totalorder %s21, 1
      %p167 = scmp.ne.s32.totalorder %s162, %s164
      %p168 = scmp.eq.s32.totalorder %s21, 0
      %p169 = por %p167, %p168
      %p170 = scmp.ne.s32.totalorder %s162, %s164
      %p171 = scmp.eq.s32.totalorder %s26, 1
      %p172 = por %p170, %p171
      %p173 = scmp.ne.s32.totalorder %s164, %s165
      %p174 = scmp.eq.s32.totalorder %s26, 0
      %p175 = por %p173, %p174
      %p176 = scmp.ne.s32.totalorder %s164, %s165
      %p177 = scmp.eq.s32.totalorder %s27, 1
      %p178 = por %p176, %p177
      %p180 = scmp.ne.s32.totalorder %s165, %s179
      %p181 = scmp.eq.s32.totalorder %s27, 0
      %p182 = por %p180, %p181
      %s183 = ssub.s32 %s28, %s40
      %s184 = ssub.s32 %s29, %s36
      %s185 = sor.u32 %s183, %s184
      %p186 = scmp.eq.s32.totalorder %s185, 0
      %s188 = sadd.s32 %s187, 1
      %s189 = scalar_select %p186, %s187, %s188
      %p192 = pneg %p186
      %p193 = scmp.eq.s32.totalorder %s21, 1
      %p194 = por %p192, %p193
      %p195 = scmp.ne.s32.totalorder %s187, %s190
      %p196 = scmp.eq.s32.totalorder %s21, 0
      %p197 = por %p195, %p196
      %p198 = scmp.ne.s32.totalorder %s187, %s190
      %p199 = scmp.eq.s32.totalorder %s26, 1
      %p200 = por %p198, %p199
      %p201 = scmp.ne.s32.totalorder %s190, %s191
      %p202 = scmp.eq.s32.totalorder %s26, 0
      %p203 = por %p201, %p202
      %p204 = scmp.ne.s32.totalorder %s190, %s191
      %p205 = scmp.eq.s32.totalorder %s27, 1
      %p206 = por %p204, %p205
      %p208 = scmp.ne.s32.totalorder %s191, %s207
      %p209 = scmp.eq.s32.totalorder %s27, 0
      %p210 = por %p208, %p209
      %p211 = scmp.le.s32.totalorder 1, %s21
      %p212 = scmp.lt.s32.totalorder %s21, 3
      %p213 = pnand %p211, %p212
      %p214 = pneg %p213
      // Predicated region
      $region9: #{tpu_custom_call.1} parent=5 // pred_check
        _
      $region10: #{tpu_custom_call.1} parent=5 // pred_check_branch
        %216 = sbr.rel (%p213) target = $region12
      $region11: #{tpu_custom_call.1} parent=5 // pred_region
        %s217 = ssub.s32 %s21, 1
        // Predicated region
        $region13: #{tpu_custom_call.1} parent=11 // pred_check
          %p218 = pneg %p112
        $region14: #{tpu_custom_call.1} parent=11 // pred_check_branch
          %220 = sbr.rel (%p218) target = $region16
        $region15: #{tpu_custom_call.1} parent=11 // pred_region
          _
        $region16: #{tpu_custom_call.1} parent=11 // pred_fallthru
          _
        // Predicated region
        $region17: #{tpu_custom_call.1} parent=11 // pred_check
          %p221 = pneg %p133
        $region18: #{tpu_custom_call.1} parent=11 // pred_check_branch
          %223 = sbr.rel (%p221) target = $region20
        $region19: #{tpu_custom_call.1} parent=11 // pred_region
          _
        $region20: #{tpu_custom_call.1} parent=11 // pred_fallthru
          _
        // Predicated region
        $region21: #{tpu_custom_call.1} parent=11 // pred_check
          %p224 = pneg %p154
        $region22: #{tpu_custom_call.1} parent=11 // pred_check_branch
          %226 = sbr.rel (%p224) target = $region24
        $region23: #{tpu_custom_call.1} parent=11 // pred_region
          _
        $region24: #{tpu_custom_call.1} parent=11 // pred_fallthru
          _
        // Predicated region
        $region25: #{tpu_custom_call.1} parent=11 // pred_check
          %p227 = pneg %p175
        $region26: #{tpu_custom_call.1} parent=11 // pred_check_branch
          %229 = sbr.rel (%p227) target = $region28
        $region27: #{tpu_custom_call.1} parent=11 // pred_region
          _
        $region28: #{tpu_custom_call.1} parent=11 // pred_fallthru
          _
      $region12: #{tpu_custom_call.1} parent=5 // pred_fallthru
        _
      %p230 = scmp.lt.s32.totalorder %s21, 2
      // Predicated region
      $region29: #{tpu_custom_call.1} parent=5 // pred_check
        %p231 = pneg %p230
      $region30: #{tpu_custom_call.1} parent=5 // pred_check_branch
        %233 = sbr.rel (%p231) target = $region32
      $region31: #{tpu_custom_call.1} parent=5 // pred_region
        // Predicated region
        $region33: #{tpu_custom_call.1} parent=31 // pred_check
          %p234 = pneg %p55
        $region34: #{tpu_custom_call.1} parent=31 // pred_check_branch
          %236 = sbr.rel (%p234) target = $region36
        $region35: #{tpu_custom_call.1} parent=31 // pred_region
          %s237 = sand.u32 %s45, 1
          %s238 = scalar_lea.sflag [#allocation3], %s237
          %s239 = sand.u32 %s45, 1
          %s240 = smul.addr %s239, 16
          %s241 = scalar_lea.vmem [#allocation2], %s240
          %s243 = ssub.s32 256, 256
          %244 = vsyncadd %s238, %s243
          %s245 = smul.addr %s28, 4
          %s246 = sadd.s32 %s29, %s245
          %s247 = smul.addr %s246, 128
          %s248 = scalar_lea.hbm %s0, %s247
          %s249 = sshll.u32 %s241, 4
          %s250 = int_to_ptr.vmem [resolvable:$true] %s249
          %255 = dma.hbm_to_vmem [thread:$0]  %s248, 256, %s250, %s238, 256, 128, 8
        $region36: #{tpu_custom_call.1} parent=31 // pred_fallthru
          _
        // Predicated region
        $region37: #{tpu_custom_call.1} parent=31 // pred_check
          %p256 = pneg %p85
        $region38: #{tpu_custom_call.1} parent=31 // pred_check_branch
          %258 = sbr.rel (%p256) target = $region40
        $region39: #{tpu_custom_call.1} parent=31 // pred_region
          %s259 = sand.u32 %s75, 1
          %s260 = scalar_lea.sflag [#allocation6], %s259
          %s261 = sand.u32 %s75, 1
          %s262 = smul.addr %s261, 16
          %s263 = scalar_lea.vmem [#allocation5], %s262
          %s264 = sadd.s32 %s29, 1
          %s266 = ssub.s32 256, 256
          %267 = vsyncadd %s260, %s266
          %s268 = smul.addr %s28, 4
          %s269 = sadd.s32 %s264, %s268
          %s270 = smul.addr %s269, 128
          %s271 = scalar_lea.hbm %s1, %s270
          %s272 = sshll.u32 %s263, 4
          %s273 = int_to_ptr.vmem [resolvable:$true] %s272
          %278 = dma.hbm_to_vmem [thread:$0]  %s271, 256, %s273, %s260, 256, 128, 8
        $region40: #{tpu_custom_call.1} parent=31 // pred_fallthru
          _
      $region32: #{tpu_custom_call.1} parent=5 // pred_fallthru
        _
      %p279 = scmp.le.s32.totalorder 1, %s21
      %p280 = scmp.lt.s32.totalorder %s21, 3
      %p281 = pnand %p279, %p280
      %p282 = pneg %p281
      // Predicated region
      $region41: #{tpu_custom_call.1} parent=5 // pred_check
        _
      $region42: #{tpu_custom_call.1} parent=5 // pred_check_branch
        %284 = sbr.rel (%p281) target = $region44
      $region43: #{tpu_custom_call.1} parent=5 // pred_region
        %s285 = ssub.s32 %s21, 1
        %s286 = sand.u32 %s48, 1
        %s287 = scalar_lea.sflag [#allocation3], %s286
        %s288 = sand.u32 %s48, 1
        %s289 = smul.addr %s288, 16
        %s290 = scalar_lea.vmem [#allocation2], %s289
        // Predicated region
        $region45: #{tpu_custom_call.1} parent=43 // pred_check
          %p291 = pneg %p61
        $region46: #{tpu_custom_call.1} parent=43 // pred_check_branch
          %293 = sbr.rel (%p291) target = $region48
        $region47: #{tpu_custom_call.1} parent=43 // pred_region
          %294 = dma.done %s287, 256
        $region48: #{tpu_custom_call.1} parent=43 // pred_fallthru
          _
        %s295 = sand.u32 %s78, 1
        %s296 = scalar_lea.sflag [#allocation6], %s295
        %s297 = sand.u32 %s78, 1
        %s298 = smul.addr %s297, 16
        %s299 = scalar_lea.vmem [#allocation5], %s298
        // Predicated region
        $region49: #{tpu_custom_call.1} parent=43 // pred_check
          %p300 = pneg %p91
        $region50: #{tpu_custom_call.1} parent=43 // pred_check_branch
          %302 = sbr.rel (%p300) target = $region52
        $region51: #{tpu_custom_call.1} parent=43 // pred_region
          %303 = dma.done %s296, 256
        $region52: #{tpu_custom_call.1} parent=43 // pred_fallthru
          _
        %s304 = sand.u32 %s48, 1
        %s305 = scalar_lea.sflag [#allocation3], %s304
        %s306 = sand.u32 %s48, 1
        %s307 = smul.addr %s306, 16
        %s308 = scalar_lea.vmem [#allocation2], %s307
        %p309 = pneg %p61
        %p310 = pneg %p58
        %s311 = sand.u32 %s78, 1
        %s312 = scalar_lea.sflag [#allocation6], %s311
        %s313 = sand.u32 %s78, 1
        %s314 = smul.addr %s313, 16
        %s315 = scalar_lea.vmem [#allocation5], %s314
        %p316 = pneg %p91
        %p317 = pneg %p88
        %p318 = pneg %p112
        %p319 = pneg %p109
        %p320 = pneg %p133
        %p321 = pneg %p130
        %p322 = pneg %p154
        %p323 = pneg %p151
        %p324 = pneg %p175
        %p325 = pneg %p172
        %p326 = pneg %p203
        %p327 = pneg %p200
        %s328 = sand.u32 %s190, 1
        %s329 = scalar_lea.sflag [#allocation4], %s328
        %s330 = sand.u32 %s190, 1
        %s331 = smul.addr %s330, 8
        %s332 = scalar_lea.vmem [#allocation7], %s331
        %s333 = sadd.s32 %s31, 1
        %v335 = vld [vmem:[%s2] sm:$0xff]
        %v336 = vld [vmem:[%s2 + $0x8] sm:$0xff]
        %v337 = vld [vmem:[%s3] sm:$0xff]
        %v338 = vld [vmem:[%s3 + $0x8] sm:$0xff]
        %v339 = vld [vmem:[%s290] sm:$0xff]
        %v340 = vld [vmem:[%s290 + $0x8] sm:$0xff]
        %342 = vset.pattern.permute.xlu0 0
        %343 = vperm.xlu0 %342, %v335
        %v344 = vpop.permute.xlu0 %343
        %347 = vset.pattern.permute.xlu0 0
        %348 = vperm.xlu0 %347, %v336
        %v349 = vpop.permute.xlu0 %348
        %v351 = vmul.f32 %v344, %v339
        %v352 = vmul.f32 %v349, %v340
        %v353 = vand.u32 2147483647, %v351
        %vm354 = vcmp.le.f32.partialorder %v353, 0.7853982
        %vm355 = vcmp.lt.s32.totalorder %v351, 0
        %v356 = vand.u32 %v351, 2139095040
        %v357 = vshrl.u32 %v356, 23
        %v358 = vsub.s32 %v357, 127
        %v359 = vand.u32 2147483647, %v351
        %v360 = vand.u32 %v359, 8388607
        %v361 = vor.u32 %v360, 8388608
        %v362 = vsub.s32 0, %v361
        %v363 = vadd.s32 %v358, 1
        %vm364 = vcmp.gt.s32.totalorder %v363, 0
        %v365 = vsel %vm364, %v363, 0
        %v366 = vshrl.u32 %v365, 5
        %v367 = vand.u32 %v365, 31
        %v368 = vsub.s32 32, %v367
        %v369 = vshrl.u32 683565275, %v368
        %v370 = vshll.u32 683565275, %v367
        %v371 = vshrl.u32 2475754826, %v368
        %v372 = vor.u32 %v370, %v371
        %v373 = vshll.u32 2475754826, %v367
        %v374 = vshrl.u32 2131351028, %v368
        %v375 = vor.u32 %v373, %v374
        %v376 = vshll.u32 2131351028, %v367
        %v377 = vshrl.u32 2102212464, %v368
        %v378 = vor.u32 %v376, %v377
        %v379 = vshll.u32 2102212464, %v367
        %v380 = vshrl.u32 920167782, %v368
        %v381 = vor.u32 %v379, %v380
        %v382 = vshll.u32 920167782, %v367
        %v383 = vshrl.u32 1326507024, %v368
        %v384 = vor.u32 %v382, %v383
        %vm385 = vcmp.lt.s32.totalorder %v366, 1
        %vm386 = vcmp.lt.s32.totalorder %v366, 2
        %vm387 = vcmp.lt.s32.totalorder %v366, 3
        %vm388 = vcmp.lt.s32.totalorder %v366, 4
        %v389 = vsel %vm385, %v369, %v372
        %v390 = vsel %vm388, %v378, 2102212464
        %v391 = vsel %vm387, %v375, %v390
        %v392 = vsel %vm386, %v389, %v391
        %v393 = vsel %vm385, %v372, %v375
        %v394 = vsel %vm388, %v381, 920167782
        %v395 = vsel %vm387, %v378, %v394
        %v396 = vsel %vm386, %v393, %v395
        %v397 = vsel %vm385, %v375, %v378
        %v398 = vsel %vm388, %v384, 1326507024
        %v399 = vsel %vm387, %v381, %v398
        %v400 = vsel %vm386, %v397, %v399
        %v401 = vshll.u32 %v361, 8
        %v402 = vmul.u32.u64.compose %v401, %v400
        %v403 = vextract.low.u32 %v402
        %v404 = vextract.high.u32 %v402
        %v405 = vmul.u32.u64.compose %v401, %v396
        %v406 = vextract.low.u32 %v405
        %v407 = vextract.high.u32 %v405
        %v408 = vmul.u32 %v401, %v392
        %v409 = vadd.s32 %v404, %v406
        %vm410 = vc.u32 %v404, %v406
        %v411 = vadd.s32 %v407, 1
        %v412 = vsel %vm410, %v411, %v407
        %v413 = vadd.s32 %v408, %v412
        %v414 = vadd.s32 %v413, 536870912
        %v415 = vshrl.u32 %v414, 30
        %v416 = vshll.u32 %v415, 30
        %v417 = vsub.s32 %v413, %v416
        %vm418 = vcmp.lt.s32.totalorder %v417, 0
        %v419 = vsub.s32 0, %v417
        %v420 = vsel %vm418, %v419, %v417
        %v421 = vclz %v420
        %v422 = vsub.s32 %v421, 2
        %vm423 = vcmp.gt.s32.totalorder 0, %v422
        %v424 = vsel %vm423, 0, %v422
        %v425 = vsub.s32 32, %v424
        %v426 = vshll.u32 %v417, %v424
        %v427 = vshrl.u32 %v409, %v425
        %v428 = vor.u32 %v426, %v427
        %v429 = vsub.s32 4294967266, %v424
        %v430 = vadd.s32 %v429, 127
        %v431 = vshll.u32 %v430, 23
        %v432 = vor.u32 4788187, %v431
        %v433 = vand.u32 2147483647, %v432
        %v435 = vcvt.s32.f32 %v428
        %v436 = vmul.f32 %v435, %v433
        %v437 = vxor.u32 %v436, 2147483648
        %v438 = vsel %vm355, %v437, %v436
        %v439 = vsub.s32 4, %v415
        %v440 = vsel %vm355, %v439, %v415
        %v441 = vsel %vm354, %v351, %v438
        %v442 = vsel %vm354, 0, %v440
        %v443 = vcosq.f32.pop %v441
        %v444 = vsinq.f32.pop %v441
        %vm445 = vweird.f32 %v351
        %v446 = vadd.s32 %v442, 3
        %v447 = vand.u32 %v446, 3
        %vm448 = vcmp.lt.s32.totalorder %v447, 2
        %vm449 = vcmp.eq.s32.totalorder %v447, 0
        %v450 = vxor.u32 %v444, 2147483648
        %v451 = vsel %vm449, %v443, %v450
        %vm452 = vcmp.eq.s32.totalorder %v447, 2
        %v453 = vxor.u32 %v443, 2147483648
        %v454 = vsel %vm452, %v453, %v444
        %v455 = vsel %vm448, %v451, %v454
        %v456 = vsel %vm445, nan, %v455
        %v457 = vand.u32 2147483647, %v352
        %vm458 = vcmp.le.f32.partialorder %v457, 0.7853982
        %vm459 = vcmp.lt.s32.totalorder %v352, 0
        %v460 = vand.u32 %v352, 2139095040
        %v461 = vshrl.u32 %v460, 23
        %v462 = vsub.s32 %v461, 127
        %v463 = vand.u32 2147483647, %v352
        %v464 = vand.u32 %v463, 8388607
        %v465 = vor.u32 %v464, 8388608
        %v466 = vsub.s32 0, %v465
        %v467 = vadd.s32 %v462, 1
        %vm468 = vcmp.gt.s32.totalorder %v467, 0
        %v469 = vsel %vm468, %v467, 0
        %v470 = vshrl.u32 %v469, 5
        %v471 = vand.u32 %v469, 31
        %v472 = vsub.s32 32, %v471
        %v473 = vshrl.u32 683565275, %v472
        %v474 = vshll.u32 683565275, %v471
        %v475 = vshrl.u32 2475754826, %v472
        %v476 = vor.u32 %v474, %v475
        %v477 = vshll.u32 2475754826, %v471
        %v478 = vshrl.u32 2131351028, %v472
        %v479 = vor.u32 %v477, %v478
        %v480 = vshll.u32 2131351028, %v471
        %v481 = vshrl.u32 2102212464, %v472
        %v482 = vor.u32 %v480, %v481
        %v483 = vshll.u32 2102212464, %v471
        %v484 = vshrl.u32 920167782, %v472
        %v485 = vor.u32 %v483, %v484
        %v486 = vshll.u32 920167782, %v471
        %v487 = vshrl.u32 1326507024, %v472
        %v488 = vor.u32 %v486, %v487
        %vm489 = vcmp.lt.s32.totalorder %v470, 1
        %vm490 = vcmp.lt.s32.totalorder %v470, 2
        %vm491 = vcmp.lt.s32.totalorder %v470, 3
        %vm492 = vcmp.lt.s32.totalorder %v470, 4
        %v493 = vsel %vm489, %v473, %v476
        %v494 = vsel %vm492, %v482, 2102212464
        %v495 = vsel %vm491, %v479, %v494
        %v496 = vsel %vm490, %v493, %v495
        %v497 = vsel %vm489, %v476, %v479
        %v498 = vsel %vm492, %v485, 920167782
        %v499 = vsel %vm491, %v482, %v498
        %v500 = vsel %vm490, %v497, %v499
        %v501 = vsel %vm489, %v479, %v482
        %v502 = vsel %vm492, %v488, 1326507024
        %v503 = vsel %vm491, %v485, %v502
        %v504 = vsel %vm490, %v501, %v503
        %v505 = vshll.u32 %v465, 8
        %v506 = vmul.u32.u64.compose %v505, %v504
        %v507 = vextract.low.u32 %v506
        %v508 = vextract.high.u32 %v506
        %v509 = vmul.u32.u64.compose %v505, %v500
        %v510 = vextract.low.u32 %v509
        %v511 = vextract.high.u32 %v509
        %v512 = vmul.u32 %v505, %v496
        %v513 = vadd.s32 %v508, %v510
        %vm514 = vc.u32 %v508, %v510
        %v515 = vadd.s32 %v511, 1
        %v516 = vsel %vm514, %v515, %v511
        %v517 = vadd.s32 %v512, %v516
        %v518 = vadd.s32 %v517, 536870912
        %v519 = vshrl.u32 %v518, 30
        %v520 = vshll.u32 %v519, 30
        %v521 = vsub.s32 %v517, %v520
        %vm522 = vcmp.lt.s32.totalorder %v521, 0
        %v523 = vsub.s32 0, %v521
        %v524 = vsel %vm522, %v523, %v521
        %v525 = vclz %v524
        %v526 = vsub.s32 %v525, 2
        %vm527 = vcmp.gt.s32.totalorder 0, %v526
        %v528 = vsel %vm527, 0, %v526
        %v529 = vsub.s32 32, %v528
        %v530 = vshll.u32 %v521, %v528
        %v531 = vshrl.u32 %v513, %v529
        %v532 = vor.u32 %v530, %v531
        %v533 = vsub.s32 4294967266, %v528
        %v534 = vadd.s32 %v533, 127
        %v535 = vshll.u32 %v534, 23
        %v536 = vor.u32 4788187, %v535
        %v537 = vand.u32 2147483647, %v536
        %v539 = vcvt.s32.f32 %v532
        %v540 = vmul.f32 %v539, %v537
        %v541 = vxor.u32 %v540, 2147483648
        %v542 = vsel %vm459, %v541, %v540
        %v543 = vsub.s32 4, %v519
        %v544 = vsel %vm459, %v543, %v519
        %v545 = vsel %vm458, %v352, %v542
        %v546 = vsel %vm458, 0, %v544
        %v547 = vcosq.f32.pop %v545
        %v548 = vsinq.f32.pop %v545
        %vm549 = vweird.f32 %v352
        %v550 = vadd.s32 %v546, 3
        %v551 = vand.u32 %v550, 3
        %vm552 = vcmp.lt.s32.totalorder %v551, 2
        %vm553 = vcmp.eq.s32.totalorder %v551, 0
        %v554 = vxor.u32 %v548, 2147483648
        %v555 = vsel %vm553, %v547, %v554
        %vm556 = vcmp.eq.s32.totalorder %v551, 2
        %v557 = vxor.u32 %v547, 2147483648
        %v558 = vsel %vm556, %v557, %v548
        %v559 = vsel %vm552, %v555, %v558
        %v560 = vsel %vm549, nan, %v559
        %v561 = vmul.f32 %v456, %v456
        %v562 = vmul.f32 %v560, %v560
        %564 = vset.pattern.permute.xlu0 0
        %565 = vperm.xlu0 %564, %v337
        %v566 = vpop.permute.xlu0 %565
        %569 = vset.pattern.permute.xlu0 0
        %570 = vperm.xlu0 %569, %v338
        %v571 = vpop.permute.xlu0 %570
        %v573 = vmul.f32 %v566, %v561
        %v574 = vmul.f32 %v571, %v562
        %v575 = vadd.f32 %v339, %v573
        %v576 = vadd.f32 %v340, %v574
        %v577 = vld [vmem:[%s299] sm:$0xff]
        %v578 = vld [vmem:[%s299 + $0x8] sm:$0xff]
        %v579 = vmul.f32 %v335, %v577
        %v580 = vmul.f32 %v336, %v578
        %v581 = vand.u32 2147483647, %v579
        %vm582 = vcmp.le.f32.partialorder %v581, 0.7853982
        %vm583 = vcmp.lt.s32.totalorder %v579, 0
        %v584 = vand.u32 %v579, 2139095040
        %v585 = vshrl.u32 %v584, 23
        %v586 = vsub.s32 %v585, 127
        %v587 = vand.u32 2147483647, %v579
        %v588 = vand.u32 %v587, 8388607
        %v589 = vor.u32 %v588, 8388608
        %v590 = vsub.s32 0, %v589
        %v591 = vadd.s32 %v586, 1
        %vm592 = vcmp.gt.s32.totalorder %v591, 0
        %v593 = vsel %vm592, %v591, 0
        %v594 = vshrl.u32 %v593, 5
        %v595 = vand.u32 %v593, 31
        %v596 = vsub.s32 32, %v595
        %v597 = vshrl.u32 683565275, %v596
        %v598 = vshll.u32 683565275, %v595
        %v599 = vshrl.u32 2475754826, %v596
        %v600 = vor.u32 %v598, %v599
        %v601 = vshll.u32 2475754826, %v595
        %v602 = vshrl.u32 2131351028, %v596
        %v603 = vor.u32 %v601, %v602
        %v604 = vshll.u32 2131351028, %v595
        %v605 = vshrl.u32 2102212464, %v596
        %v606 = vor.u32 %v604, %v605
        %v607 = vshll.u32 2102212464, %v595
        %v608 = vshrl.u32 920167782, %v596
        %v609 = vor.u32 %v607, %v608
        %v610 = vshll.u32 920167782, %v595
        %v611 = vshrl.u32 1326507024, %v596
        %v612 = vor.u32 %v610, %v611
        %vm613 = vcmp.lt.s32.totalorder %v594, 1
        %vm614 = vcmp.lt.s32.totalorder %v594, 2
        %vm615 = vcmp.lt.s32.totalorder %v594, 3
        %vm616 = vcmp.lt.s32.totalorder %v594, 4
        %v617 = vsel %vm613, %v597, %v600
        %v618 = vsel %vm616, %v606, 2102212464
        %v619 = vsel %vm615, %v603, %v618
        %v620 = vsel %vm614, %v617, %v619
        %v621 = vsel %vm613, %v600, %v603
        %v622 = vsel %vm616, %v609, 920167782
        %v623 = vsel %vm615, %v606, %v622
        %v624 = vsel %vm614, %v621, %v623
        %v625 = vsel %vm613, %v603, %v606
        %v626 = vsel %vm616, %v612, 1326507024
        %v627 = vsel %vm615, %v609, %v626
        %v628 = vsel %vm614, %v625, %v627
        %v629 = vshll.u32 %v589, 8
        %v630 = vmul.u32.u64.compose %v629, %v628
        %v631 = vextract.low.u32 %v630
        %v632 = vextract.high.u32 %v630
        %v633 = vmul.u32.u64.compose %v629, %v624
        %v634 = vextract.low.u32 %v633
        %v635 = vextract.high.u32 %v633
        %v636 = vmul.u32 %v629, %v620
        %v637 = vadd.s32 %v632, %v634
        %vm638 = vc.u32 %v632, %v634
        %v639 = vadd.s32 %v635, 1
        %v640 = vsel %vm638, %v639, %v635
        %v641 = vadd.s32 %v636, %v640
        %v642 = vadd.s32 %v641, 536870912
        %v643 = vshrl.u32 %v642, 30
        %v644 = vshll.u32 %v643, 30
        %v645 = vsub.s32 %v641, %v644
        %vm646 = vcmp.lt.s32.totalorder %v645, 0
        %v647 = vsub.s32 0, %v645
        %v648 = vsel %vm646, %v647, %v645
        %v649 = vclz %v648
        %v650 = vsub.s32 %v649, 2
        %vm651 = vcmp.gt.s32.totalorder 0, %v650
        %v652 = vsel %vm651, 0, %v650
        %v653 = vsub.s32 32, %v652
        %v654 = vshll.u32 %v645, %v652
        %v655 = vshrl.u32 %v637, %v653
        %v656 = vor.u32 %v654, %v655
        %v657 = vsub.s32 4294967266, %v652
        %v658 = vadd.s32 %v657, 127
        %v659 = vshll.u32 %v658, 23
        %v660 = vor.u32 4788187, %v659
        %v661 = vand.u32 2147483647, %v660
        %v663 = vcvt.s32.f32 %v656
        %v664 = vmul.f32 %v663, %v661
        %v665 = vxor.u32 %v664, 2147483648
        %v666 = vsel %vm583, %v665, %v664
        %v667 = vsub.s32 4, %v643
        %v668 = vsel %vm583, %v667, %v643
        %v669 = vsel %vm582, %v579, %v666
        %v670 = vsel %vm582, 0, %v668
        %v671 = vcosq.f32.pop %v669
        %v672 = vsinq.f32.pop %v669
        %vm673 = vweird.f32 %v579
        %v674 = vadd.s32 %v670, 3
        %v675 = vand.u32 %v674, 3
        %vm676 = vcmp.lt.s32.totalorder %v675, 2
        %vm677 = vcmp.eq.s32.totalorder %v675, 0
        %v678 = vxor.u32 %v672, 2147483648
        %v679 = vsel %vm677, %v671, %v678
        %vm680 = vcmp.eq.s32.totalorder %v675, 2
        %v681 = vxor.u32 %v671, 2147483648
        %v682 = vsel %vm680, %v681, %v672
        %v683 = vsel %vm676, %v679, %v682
        %v684 = vsel %vm673, nan, %v683
        %v685 = vand.u32 2147483647, %v580
        %vm686 = vcmp.le.f32.partialorder %v685, 0.7853982
        %vm687 = vcmp.lt.s32.totalorder %v580, 0
        %v688 = vand.u32 %v580, 2139095040
        %v689 = vshrl.u32 %v688, 23
        %v690 = vsub.s32 %v689, 127
        %v691 = vand.u32 2147483647, %v580
        %v692 = vand.u32 %v691, 8388607
        %v693 = vor.u32 %v692, 8388608
        %v694 = vsub.s32 0, %v693
        %v695 = vadd.s32 %v690, 1
        %vm696 = vcmp.gt.s32.totalorder %v695, 0
        %v697 = vsel %vm696, %v695, 0
        %v698 = vshrl.u32 %v697, 5
        %v699 = vand.u32 %v697, 31
        %v700 = vsub.s32 32, %v699
        %v701 = vshrl.u32 683565275, %v700
        %v702 = vshll.u32 683565275, %v699
        %v703 = vshrl.u32 2475754826, %v700
        %v704 = vor.u32 %v702, %v703
        %v705 = vshll.u32 2475754826, %v699
        %v706 = vshrl.u32 2131351028, %v700
        %v707 = vor.u32 %v705, %v706
        %v708 = vshll.u32 2131351028, %v699
        %v709 = vshrl.u32 2102212464, %v700
        %v710 = vor.u32 %v708, %v709
        %v711 = vshll.u32 2102212464, %v699
        %v712 = vshrl.u32 920167782, %v700
        %v713 = vor.u32 %v711, %v712
        %v714 = vshll.u32 920167782, %v699
        %v715 = vshrl.u32 1326507024, %v700
        %v716 = vor.u32 %v714, %v715
        %vm717 = vcmp.lt.s32.totalorder %v698, 1
        %vm718 = vcmp.lt.s32.totalorder %v698, 2
        %vm719 = vcmp.lt.s32.totalorder %v698, 3
        %vm720 = vcmp.lt.s32.totalorder %v698, 4
        %v721 = vsel %vm717, %v701, %v704
        %v722 = vsel %vm720, %v710, 2102212464
        %v723 = vsel %vm719, %v707, %v722
        %v724 = vsel %vm718, %v721, %v723
        %v725 = vsel %vm717, %v704, %v707
        %v726 = vsel %vm720, %v713, 920167782
        %v727 = vsel %vm719, %v710, %v726
        %v728 = vsel %vm718, %v725, %v727
        %v729 = vsel %vm717, %v707, %v710
        %v730 = vsel %vm720, %v716, 1326507024
        %v731 = vsel %vm719, %v713, %v730
        %v732 = vsel %vm718, %v729, %v731
        %v733 = vshll.u32 %v693, 8
        %v734 = vmul.u32.u64.compose %v733, %v732
        %v735 = vextract.low.u32 %v734
        %v736 = vextract.high.u32 %v734
        %v737 = vmul.u32.u64.compose %v733, %v728
        %v738 = vextract.low.u32 %v737
        %v739 = vextract.high.u32 %v737
        %v740 = vmul.u32 %v733, %v724
        %v741 = vadd.s32 %v736, %v738
        %vm742 = vc.u32 %v736, %v738
        %v743 = vadd.s32 %v739, 1
        %v744 = vsel %vm742, %v743, %v739
        %v745 = vadd.s32 %v740, %v744
        %v746 = vadd.s32 %v745, 536870912
        %v747 = vshrl.u32 %v746, 30
        %v748 = vshll.u32 %v747, 30
        %v749 = vsub.s32 %v745, %v748
        %vm750 = vcmp.lt.s32.totalorder %v749, 0
        %v751 = vsub.s32 0, %v749
        %v752 = vsel %vm750, %v751, %v749
        %v753 = vclz %v752
        %v754 = vsub.s32 %v753, 2
        %vm755 = vcmp.gt.s32.totalorder 0, %v754
        %v756 = vsel %vm755, 0, %v754
        %v757 = vsub.s32 32, %v756
        %v758 = vshll.u32 %v749, %v756
        %v759 = vshrl.u32 %v741, %v757
        %v760 = vor.u32 %v758, %v759
        %v761 = vsub.s32 4294967266, %v756
        %v762 = vadd.s32 %v761, 127
        %v763 = vshll.u32 %v762, 23
        %v764 = vor.u32 4788187, %v763
        %v765 = vand.u32 2147483647, %v764
        %v767 = vcvt.s32.f32 %v760
        %v768 = vmul.f32 %v767, %v765
        %v769 = vxor.u32 %v768, 2147483648
        %v770 = vsel %vm687, %v769, %v768
        %v771 = vsub.s32 4, %v747
        %v772 = vsel %vm687, %v771, %v747
        %v773 = vsel %vm686, %v580, %v770
        %v774 = vsel %vm686, 0, %v772
        %v775 = vcosq.f32.pop %v773
        %v776 = vsinq.f32.pop %v773
        %vm777 = vweird.f32 %v580
        %v778 = vadd.s32 %v774, 3
        %v779 = vand.u32 %v778, 3
        %vm780 = vcmp.lt.s32.totalorder %v779, 2
        %vm781 = vcmp.eq.s32.totalorder %v779, 0
        %v782 = vxor.u32 %v776, 2147483648
        %v783 = vsel %vm781, %v775, %v782
        %vm784 = vcmp.eq.s32.totalorder %v779, 2
        %v785 = vxor.u32 %v775, 2147483648
        %v786 = vsel %vm784, %v785, %v776
        %v787 = vsel %vm780, %v783, %v786
        %v788 = vsel %vm777, nan, %v787
        %v789 = vmul.f32 %v684, %v684
        %v790 = vmul.f32 %v788, %v788
        %v791 = vmul.f32 %v337, %v789
        %v792 = vmul.f32 %v338, %v790
        %v793 = vadd.f32 %v577, %v791
        %v794 = vadd.f32 %v578, %v792
        %v795 = vlaneseq
        %v796 = vand.u32 %v795, 127
        %vm797 = vcmp.eq.s32.totalorder %v796, 127
        %798 = vrot.lane.b32.xlu0 %v575, 127
        %v799 = vpop.permute.xlu0 %798
        %800 = vrot.lane.b32.xlu0 %v576, 127
        %v801 = vpop.permute.xlu0 %800
        %803 = vset.pattern.permute.xlu0 0
        %804 = vperm.xlu0 %803, %v793
        %v805 = vpop.permute.xlu0 %804
        %808 = vset.pattern.permute.xlu0 0
        %809 = vperm.xlu0 %808, %v794
        %v810 = vpop.permute.xlu0 %809
        %v812 = vsel %vm797, %v805, %v799
        %v813 = vsel %vm797, %v810, %v801
        %v814 = vpack.c.bf16 %v813, %v812
        %v815 = vpack.c.bf16 %v576, %v575
        %v816 = vld [vmem:[%s5] sm:$0xff]
        %v817 = vld [vmem:[%s4] sm:$0xf]
        %819 = vset.pattern.permute.xlu0 0
        %820 = vperm.xlu0 %819, %v816
        %v821 = vpop.permute.xlu0 %820
        %vm823 = vcmask 261120
        %v825 = vsel %vm823, %v817, 0
        %827 = vmatprep.subr.bf16.mxu0 0
        %828 = vmatpush1.bf16.msra.mxu0 0
        %829 = vmatprep.subr.bf16.mxu0 0
        %830 = vmatpush1.bf16.msra.mxu0 0
        %831 = vmatprep.subr.bf16.mxu0 0
        %832 = vmatpush1.bf16.msra.mxu0 0
        %833 = vmatprep.subr.bf16.mxu0 0
        %834 = vmatpush1.bf16.msra.mxu0 0
        %835 = vmatprep.subr.bf16.mxu0 0
        %836 = vmatpush1.bf16.msra.mxu0 0
        %837 = vmatprep.subr.bf16.mxu0 0
        %838 = vmatpush1.bf16.msra.mxu0 0
        %839 = vmatprep.subr.bf16.mxu0 0
        %840 = vmatpush1.bf16.msra.mxu0 %v815
        %841 = vmatprep.subr.bf16.mxu0 0
        %842 = vmatpush1.bf16.msra.mxu0 %v814
        %843 = vmatprep.subr.bf16.mxu0 0
        %844 = vmatpush2.bf16.msra.mxu0 0
        %845 = vmatprep.subr.bf16.mxu0 0
        %846 = vmatpush2.bf16.msra.mxu0 0
        %847 = vmatprep.subr.bf16.mxu0 0
        %848 = vmatpush2.bf16.msra.mxu0 0
        %849 = vmatprep.subr.bf16.mxu0 0
        %850 = vmatpush2.bf16.msra.mxu0 0
        %851 = vmatprep.subr.bf16.mxu0 0
        %852 = vmatpush2.bf16.msra.mxu0 0
        %853 = vmatprep.subr.bf16.mxu0 0
        %854 = vmatpush2.bf16.msra.mxu0 0
        %855 = vmatprep.subr.bf16.mxu0 0
        %856 = vmatpush2.bf16.msra.mxu0 0
        %857 = vmatprep.subr.bf16.mxu0 0
        %858 = vmatpush2.bf16.msra.mxu0 0
        %859 = vmatprep.mubr.bf16.mxu0 0
        %860 = vmatmul.mubr.bf16.gmra.mxu0 %v825
        %v861 = vpop.f32.mrf.mxu0
        %v862 = vadd.f32 %v821, %v861
        %v863 = vpop.f32.mrf.mxu0
        %v864 = vpop.f32.mrf.mxu0
        %v865 = vpop.f32.mrf.mxu0
        %866 = vdwg.mxu0
        %s867 = scalar_lea.vmem %s4, 4
        %v868 = vld [vmem:[%s867] sm:$0xf]
        %v870 = vsel %vm823, %v868, 0
        %872 = vmatprep.subr.bf16.mxu0 0
        %873 = vmatpush1.bf16.msra.mxu0 0
        %874 = vmatprep.subr.bf16.mxu0 0
        %875 = vmatpush1.bf16.msra.mxu0 0
        %876 = vmatprep.subr.bf16.mxu0 0
        %877 = vmatpush1.bf16.msra.mxu0 0
        %878 = vmatprep.subr.bf16.mxu0 0
        %879 = vmatpush1.bf16.msra.mxu0 0
        %880 = vmatprep.subr.bf16.mxu0 0
        %881 = vmatpush1.bf16.msra.mxu0 0
        %882 = vmatprep.subr.bf16.mxu0 0
        %883 = vmatpush1.bf16.msra.mxu0 0
        %884 = vmatprep.subr.bf16.mxu0 0
        %885 = vmatpush1.bf16.msra.mxu0 %v815
        %886 = vmatprep.subr.bf16.mxu0 0
        %887 = vmatpush1.bf16.msra.mxu0 %v814
        %888 = vmatprep.subr.bf16.mxu0 0
        %889 = vmatpush2.bf16.msra.mxu0 0
        %890 = vmatprep.subr.bf16.mxu0 0
        %891 = vmatpush2.bf16.msra.mxu0 0
        %892 = vmatprep.subr.bf16.mxu0 0
        %893 = vmatpush2.bf16.msra.mxu0 0
        %894 = vmatprep.subr.bf16.mxu0 0
        %895 = vmatpush2.bf16.msra.mxu0 0
        %896 = vmatprep.subr.bf16.mxu0 0
        %897 = vmatpush2.bf16.msra.mxu0 0
        %898 = vmatprep.subr.bf16.mxu0 0
        %899 = vmatpush2.bf16.msra.mxu0 0
        %900 = vmatprep.subr.bf16.mxu0 0
        %901 = vmatpush2.bf16.msra.mxu0 0
        %902 = vmatprep.subr.bf16.mxu0 0
        %903 = vmatpush2.bf16.msra.mxu0 0
        %904 = vmatprep.mubr.bf16.mxu0 0
        %905 = vmatmul.mubr.bf16.gmra.mxu0 %v870
        %v906 = vpop.f32.mrf.mxu0
        %v907 = vadd.f32 %v821, %v906
        %v908 = vpop.f32.mrf.mxu0
        %v909 = vpop.f32.mrf.mxu0
        %v910 = vpop.f32.mrf.mxu0
        %911 = vdwg.mxu0
        %v912 = vpack.c.bf16 %v862, %v862
        %v913 = vpack.c.bf16 %v907, %v907
        %914 = vst [vmem:[%s332] sm:$0xf] %v912
        %915 = vst [vmem:[%s332 + $0x4] sm:$0xf] %v913
        %s916 = sand.u32 %s190, 1
        %s917 = scalar_lea.sflag [#allocation4], %s916
        %s918 = sand.u32 %s190, 1
        %s919 = smul.addr %s918, 8
        %s920 = scalar_lea.vmem [#allocation7], %s919
        // Predicated region
        $region53: #{tpu_custom_call.1} parent=43 // pred_check
          %p921 = pneg %p200
        $region54: #{tpu_custom_call.1} parent=43 // pred_check_branch
          %923 = sbr.rel (%p921) target = $region56
        $region55: #{tpu_custom_call.1} parent=43 // pred_region
          %s925 = ssub.s32 128, 128
          %926 = vsyncadd %s917, %s925
          %s927 = smul.addr %s30, 2
          %s928 = sadd.s32 %s31, %s927
          %s929 = smul.addr %s928, 64
          %s930 = scalar_lea.hbm %s6, %s929
          %s931 = sshll.u32 %s920, 4
          %s932 = int_to_ptr.vmem [resolvable:$true] %s931
          %937 = dma.vmem_to_hbm [thread:$0]  %s932, 128, %s930, %s917, 64, 64, 4
        $region56: #{tpu_custom_call.1} parent=43 // pred_fallthru
          _
      $region44: #{tpu_custom_call.1} parent=5 // pred_fallthru
        _
      %p938 = scmp.le.s32.totalorder 2, %s21
      // Predicated region
      $region57: #{tpu_custom_call.1} parent=5 // pred_check
        %p939 = pneg %p938
      $region58: #{tpu_custom_call.1} parent=5 // pred_check_branch
        %941 = sbr.rel (%p939) target = $region60
      $region59: #{tpu_custom_call.1} parent=5 // pred_region
        %s942 = ssub.s32 %s21, 2
        // Predicated region
        $region61: #{tpu_custom_call.1} parent=59 // pred_check
          %p943 = pneg %p206
        $region62: #{tpu_custom_call.1} parent=59 // pred_check_branch
          %945 = sbr.rel (%p943) target = $region64
        $region63: #{tpu_custom_call.1} parent=59 // pred_region
          %s946 = sand.u32 %s191, 1
          %s947 = scalar_lea.sflag [#allocation4], %s946
          %s948 = sand.u32 %s191, 1
          %s949 = smul.addr %s948, 8
          %s950 = scalar_lea.vmem [#allocation7], %s949
          %951 = dma.done %s947, 128
        $region64: #{tpu_custom_call.1} parent=59 // pred_fallthru
          _
      $region60: #{tpu_custom_call.1} parent=5 // pred_fallthru
        _
    $region6: #{tpu_custom_call.1} parent=1 // loop_footer
      %s25 = sadd.s32 1, %s21
    $region7: #{tpu_custom_call.1} parent=1 // loop_footer_branch
      %20 = sbr.rel target = $region3
    $region8: #{tpu_custom_call.1} parent=1 // loop_exit
      _
    %952 = vsyncpa [#allocation3], 1
    %s953 = scalar_lea.sflag [#allocation3], 1
    %954 = vsyncpa %s953, 1
    %955 = vsyncpa [#allocation6], 1
    %s956 = scalar_lea.sflag [#allocation6], 1
    %957 = vsyncpa %s956, 1
    %958 = vsyncpa [#allocation4], 1
    %s959 = scalar_lea.sflag [#allocation4], 1
    %960 = vsyncpa %s959, 1

</llo_original>
